<compile_context>
chip_gen: v7x
topology: tpu7x:2x2x1
jax: 0.10.0
libtpu: 0.0.40
codegen_flags: <defaults>
</compile_context>

<pallas_src>
import jax
import jax.numpy as jnp
import numpy as np
from jax.experimental import pallas as pl
from jax.experimental.pallas import tpu as pltpu


# ----------------------------- Pallas kernel ------------------------------- #

def _inter_fused_kernel(x_ref, w_ref, b_ref, o_ref):
    """One fused step: o = leaky_relu(x @ W_all + b_all, 0.1).

    Shapes per grid step:
      x : (TB, in_ch)      w : (in_ch, C*2H*2W)   b : (1, C*2H*2W)
      o : (TB, C*2H*2W)    (lane-dense flattened NCHW output)
    """
    z = jnp.dot(x_ref[...], w_ref[...],
                preferred_element_type=jnp.float32,
                precision=jax.lax.Precision.HIGHEST) + b_ref[...]
    o_ref[...] = jnp.where(z > 0, z, 0.1 * z)          # leaky_relu(0.1)


# ------------------------ one-time parameter prep --------------------------- #

def _fold_conv_pixel_shuffle(wc, bc, H, W):
    """Build (M, bias) in float64 so that for a flattened NCHW (Cin,H,W) vector y,
        y @ M + bias == flatten_NCHW( pixel_shuffle_2( conv2d_same(y, wc) + bc ) ).
    Pure re-layout of conv weights (cross-correlation, 'same' pad, stride 1)."""
    Cout, Cin, KH, KW = wc.shape
    C = Cout // 4                      # channels after pixel_shuffle(2)
    OH, OW = 2 * H, 2 * W
    M = np.zeros((Cin * H * W, C * OH * OW), np.float64)
    bias = np.zeros((C * OH * OW,), np.float64)
    for co in range(Cout):
        c, r = divmod(co, 4)
        i, j = divmod(r, 2)            # pixel_shuffle sub-pixel offsets
        for h in range(H):
            for w in range(W):
                col = c * OH * OW + (2 * h + i) * OW + (2 * w + j)
                bias[col] = bc[co]
                for kh in range(KH):
                    hi = h + kh - KH // 2
                    if not (0 <= hi < H):
                        continue
                    for kw in range(KW):
                        wi = w + kw - KW // 2
                        if not (0 <= wi < W):
                            continue
                        rows = np.arange(Cin) * (H * W) + hi * W + wi
                        M[rows, col] = wc[co, :, kh, kw]
    return M, bias


def prepare_params(params, ldr):
    """Collapse dense1 -> dense2 -> conv3x3 -> pixel_shuffle into a single affine map
    (done once, on host, in float64; cast to f32 for the kernel)."""
    w1 = np.asarray(params["w1"], np.float64)   # (ae_ch, in_ch)   torch Linear layout
    b1 = np.asarray(params["b1"], np.float64)   # (ae_ch,)
    w2 = np.asarray(params["w2"], np.float64)   # (D2, ae_ch)
    b2 = np.asarray(params["b2"], np.float64)   # (D2,)
    wc = np.asarray(params["wc"], np.float64)   # (4*C, C, 3, 3)
    bc = np.asarray(params["bc"], np.float64)   # (4*C,)

    M, mbias = _fold_conv_pixel_shuffle(wc, bc, ldr, ldr)   # (D2, out_cols), (out_cols,)
    w_all = w1.T @ w2.T @ M                                  # (in_ch, out_cols)
    b_all = (b1 @ w2.T + b2) @ M + mbias                     # (out_cols,)
    return {
        "w": jnp.asarray(w_all, jnp.float32),
        "b": jnp.asarray(b_all.reshape(1, -1), jnp.float32),
    }


# ------------------------------- forward ------------------------------------ #

def inter_forward(inp, prep, ae_out_ch, ldr):
    """Equivalent of Inter.forward (PyTorch), returning NCHW (B, C, 2*ldr, 2*ldr)."""
    B, in_ch = inp.shape
    out_cols = ae_out_ch * (2 * ldr) * (2 * ldr)

    # Pad batch to a full-sublane multiple; tile it so large B pipelines / shards.
    Bp = max(8, ((B + 7) // 8) * 8)
    TB = 256 if Bp > 256 else Bp
    Bp = ((Bp + TB - 1) // TB) * TB
    x = inp if Bp == B else jnp.pad(inp, ((0, Bp - B), (0, 0)))

    out_flat = pl.pallas_call(
        _inter_fused_kernel,
        out_shape=jax.ShapeDtypeStruct((Bp, out_cols), jnp.float32),
        grid_spec=pltpu.PrefetchScalarGridSpec(
            num_scalar_prefetch=0,
            grid=(Bp // TB,),
            in_specs=[
                pl.BlockSpec((TB, in_ch), lambda i: (i, 0)),       # x rows (pipelined)
                pl.BlockSpec((in_ch, out_cols), lambda i: (0, 0)),  # W_all (resident)
                pl.BlockSpec((1, out_cols), lambda i: (0, 0)),      # b_all (resident)
            ],
            out_specs=pl.BlockSpec((TB, out_cols), lambda i: (i, 0)),
        ),
        compiler_params=pltpu.CompilerParams(
            dimension_semantics=("parallel",)),
    )(x, prep["w"], prep["b"])

    # Flat layout is already NCHW order -> slice pad rows + contiguous reshape only.
    return out_flat[:B].reshape(B, ae_out_ch, 2 * ldr, 2 * ldr)


# --------------------------- pure-JAX reference ----------------------------- #

def inter_reference(inp, params, ae_out_ch, ldr):
    h = inp @ params["w1"].T + params["b1"]
    y = h @ params["w2"].T + params["b2"]
    x = y.reshape(inp.shape[0], ae_out_ch, ldr, ldr)
    out = jax.lax.conv_general_dilated(
        x, params["wc"], window_strides=(1, 1), padding="SAME",
        dimension_numbers=("NCHW", "OIHW", "NCHW"))
    out = out + params["bc"][None, :, None, None]
    out = jnp.where(out > 0, out, 0.1 * out)
    B, C4, H, W = out.shape
    C = C4 // 4
    out = out.reshape(B, C, 2, 2, H, W).transpose(0, 1, 4, 2, 5, 3)
    return out.reshape(B, C, 2 * H, 2 * W)


# --------------------------------- main ------------------------------------- #

if __name__ == "__main__":
    key = jax.random.PRNGKey(0)
    B, in_ch, ae_ch, ae_out_ch, resolution = 2, 32, 32, 8, 64
    ldr = resolution // 16                     # lowest_dense_res = 4
    D2 = ldr * ldr * ae_out_ch                 # dense2 output width = 128

    ks = jax.random.split(key, 7)
    params = {
        # torch nn.Linear / nn.Conv2d parameter shapes, deterministic init
        "w1": jax.random.normal(ks[0], (ae_ch, in_ch), jnp.float32) * 0.1,
        "b1": jax.random.normal(ks[1], (ae_ch,), jnp.float32) * 0.1,
        "w2": jax.random.normal(ks[2], (D2, ae_ch), jnp.float32) * 0.1,
        "b2": jax.random.normal(ks[3], (D2,), jnp.float32) * 0.1,
        "wc": jax.random.normal(ks[4], (4 * ae_out_ch, ae_out_ch, 3, 3), jnp.float32) * 0.1,
        "bc": jax.random.normal(ks[5], (4 * ae_out_ch,), jnp.float32) * 0.1,
    }
    x = jax.random.normal(ks[6], (B, in_ch), jnp.float32)

    prep = prepare_params(params, ldr)                 # one-time offline weight fold
    fwd = jax.jit(lambda xx, pp: inter_forward(xx, pp, ae_out_ch, ldr))

    out = jax.block_until_ready(fwd(x, prep))
    ref = inter_reference(x, params, ae_out_ch, ldr)

    assert out.shape == (B, ae_out_ch, 2 * ldr, 2 * ldr)
    np.testing.assert_allclose(np.asarray(out), np.asarray(ref), rtol=1e-4, atol=1e-4)
    print("KERNEL_OK")
</pallas_src>

<mosaic_0001>
module attributes {stable_mosaic.version = 11 : i64} {
  func.func @_inter_fused_kernel(%arg0: i32, %arg1: memref<8x32xf32, #tpu.memory_space<vmem>>, %arg2: memref<32x512xf32, #tpu.memory_space<vmem>>, %arg3: memref<1x512xf32, #tpu.memory_space<vmem>>, %arg4: memref<8x512xf32, #tpu.memory_space<vmem>>) attributes {dimension_semantics = [#tpu.dimension_semantics<parallel>], iteration_bounds = array<i64: 1>, scalar_prefetch = 0 : i64, scratch_operands = 0 : i64, tpu.core_type = #tpu.core_type<tc>, window_params = [{transform_indices = @transform_0, window_bounds = array<i64: 8, 32>}, {pipeline_mode = #tpu.pipeline_mode<synchronous>, transform_indices = @transform_1, window_bounds = array<i64: 32, 512>}, {pipeline_mode = #tpu.pipeline_mode<synchronous>, transform_indices = @transform_2, window_bounds = array<i64: 1, 512>}, {transform_indices = @transform_3, window_bounds = array<i64: 8, 512>}]} {
    %c0 = arith.constant 0 : index
    %c0_0 = arith.constant 0 : index
    %0 = vector.load %arg1[%c0, %c0_0] : memref<8x32xf32, #tpu.memory_space<vmem>>, vector<8x32xf32>
    %c0_1 = arith.constant 0 : index
    %c0_2 = arith.constant 0 : index
    %1 = vector.load %arg2[%c0_1, %c0_2] : memref<32x512xf32, #tpu.memory_space<vmem>>, vector<32x512xf32>
    %cst = arith.constant dense<0.000000e+00> : vector<8x512xf32>
    %2 = tpu.matmul %0, %1, %cst {dimension_numbers = #tpu.dot_dimension_numbers<[1], [0], [0], [1], [0, 0, 1, 1], [], []>, precision = #tpu.contract_precision<fp32>} : vector<8x32xf32>, vector<32x512xf32>, vector<8x512xf32> -> vector<8x512xf32>
    %c0_3 = arith.constant 0 : index
    %c0_4 = arith.constant 0 : index
    %3 = vector.load %arg3[%c0_3, %c0_4] : memref<1x512xf32, #tpu.memory_space<vmem>>, vector<1x512xf32>
    %4 = vector.broadcast %3 : vector<1x512xf32> to vector<8x512xf32>
    %5 = arith.addf %2, %4 : vector<8x512xf32>
    %cst_5 = arith.constant 0.000000e+00 : f32
    %6 = vector.broadcast %cst_5 : f32 to vector<8x512xf32>
    %7 = arith.cmpf ogt, %5, %6 : vector<8x512xf32>
    %cst_6 = arith.constant 1.000000e-01 : f32
    %8 = vector.broadcast %cst_6 : f32 to vector<8x512xf32>
    %9 = arith.mulf %8, %5 : vector<8x512xf32>
    %10 = arith.select %7, %5, %9 : vector<8x512xi1>, vector<8x512xf32>
    %c0_7 = arith.constant 0 : index
    %c0_8 = arith.constant 0 : index
    %11 = vector.load %arg4[%c0_7, %c0_8] : memref<8x512xf32, #tpu.memory_space<vmem>>, vector<8x512xf32>
    tpu.vector_store %arg4[%c0_7, %c0_8], %10 {strides = array<i32>} : memref<8x512xf32, #tpu.memory_space<vmem>>, vector<8x512xf32>,
    return
  }
  func.func @transform_0(%arg0: i32) -> (i32, i32) {
    %c0_i32 = arith.constant 0 : i32
    %c0_i32_0 = arith.constant 0 : i32
    return %arg0, %c0_i32 : i32, i32
  }
  func.func @transform_1(%arg0: i32) -> (i32, i32) {
    %c0_i32 = arith.constant 0 : i32
    %c0_i32_0 = arith.constant 0 : i32
    %c0_i32_1 = arith.constant 0 : i32
    return %c0_i32, %c0_i32_0 : i32, i32
  }
  func.func @transform_2(%arg0: i32) -> (i32, i32) {
    %c0_i32 = arith.constant 0 : i32
    %c0_i32_0 = arith.constant 0 : i32
    %c0_i32_1 = arith.constant 0 : i32
    return %c0_i32, %c0_i32_0 : i32, i32
  }
  func.func @transform_3(%arg0: i32) -> (i32, i32) {
    %c0_i32 = arith.constant 0 : i32
    %c0_i32_0 = arith.constant 0 : i32
    return %arg0, %c0_i32 : i32, i32
  }
}

</mosaic_0001>

<llo_original>
// kernel: _lambda_.1
$region0: #{_lambda_.1}
  #allocation0 [shape = 'u32[]', space=smem, size = 0x4, offset = 0x4, fixed_abs, tag = 'smem constant byte address 0x4 - core index']
  #allocation1 [shape = 'u32[144,128]{1,0:T(1,128)}', space=vmem, size = 0x12000, scoped, tag = 'internal scratch']
  %s0 = inlined_call_operand.vmem [shape: f32[8,32], index: 0, kind: input, shape index: {}]
  %s1 = inlined_call_operand.hbm [shape: f32[32,512], index: 1, kind: input, shape index: {}]
  %s2 = inlined_call_operand.vmem [shape: f32[1,512], index: 2, kind: input, shape index: {}]
  %s3 = inlined_call_operand.vmem [shape: f32[8,512], index: 3, kind: output, shape index: {}]
  %s4 = sld [smem:[#allocation0]]
  $region26: #{_lambda_.1} parent=0
    _
  %s6 = ssub.s32 1, %s4
  %s7 = scalar_select 0, %s6, %s4
  $region1: #{_lambda_.1} parent=0
    #allocation2 [shape = 'u8[65536]{0}', space=vmem, size = 0x10000, scoped, tag = 'input window, operand 1, single buffered']
    #allocation3 [shape = 's32[1]{0}', space=sflag, size = 0x4, scoped, tag = 'scoped memory for _lambda_.1']
    %8 = vsyncpa [#allocation3], 0
    // Predicated region
    $region2: #{_lambda_.1} parent=1 // pred_check
      _
    $region3: #{_lambda_.1} parent=1 // pred_check_branch
      %10 = sbr.rel (0) target = $region5
    $region4: #{_lambda_.1} parent=1 // pred_region
      _
    $region5: #{_lambda_.1} parent=1 // pred_fallthru
      _
    // Predicated region
    $region6: #{_lambda_.1} parent=1 // pred_check
      _
    $region7: #{_lambda_.1} parent=1 // pred_check_branch
      %12 = sbr.rel (0) target = $region9
    $region8: #{_lambda_.1} parent=1 // pred_region
      %s14 = ssub.s32 2048, 2048
      %15 = vsyncadd [#allocation3], %s14
      %s16 = sshll.u32 [#allocation2], 4
      %s17 = int_to_ptr.vmem [resolvable:$true] %s16
      %22 = dma.hbm_to_vmem [thread:$0]  %s1, 2048, %s17, [#allocation3], 512, 512, 32
    $region9: #{_lambda_.1} parent=1 // pred_fallthru
      _
    // Predicated region
    $region10: #{_lambda_.1} parent=1 // pred_check
      _
    $region11: #{_lambda_.1} parent=1 // pred_check_branch
      %24 = sbr.rel (0) target = $region13
    $region12: #{_lambda_.1} parent=1 // pred_region
      _
    $region13: #{_lambda_.1} parent=1 // pred_fallthru
      _
    // Predicated region
    $region14: #{_lambda_.1} parent=1 // pred_check
      _
    $region15: #{_lambda_.1} parent=1 // pred_check_branch
      %26 = sbr.rel (0) target = $region17
    $region16: #{_lambda_.1} parent=1 // pred_region
      %27 = dma.done [#allocation3], 2048
    $region17: #{_lambda_.1} parent=1 // pred_fallthru
      _
    %v28 = vld [vmem:[%s0] sm:$0xff]
    %v29 = vld [vmem:[#allocation2] sm:$0xff]
    %v30 = vld [vmem:[#allocation2 + $0x8] sm:$0xff]
    %v31 = vld [vmem:[#allocation2 + $0x10] sm:$0xff]
    %v32 = vld [vmem:[#allocation2 + $0x18] sm:$0xff]
    %v33 = vld [vmem:[#allocation2 + $0x20] sm:$0xff]
    %v34 = vld [vmem:[#allocation2 + $0x28] sm:$0xff]
    %v35 = vld [vmem:[#allocation2 + $0x30] sm:$0xff]
    %v36 = vld [vmem:[#allocation2 + $0x38] sm:$0xff]
    %v37 = vld [vmem:[#allocation2 + $0x40] sm:$0xff]
    %v38 = vld [vmem:[#allocation2 + $0x48] sm:$0xff]
    %v39 = vld [vmem:[#allocation2 + $0x50] sm:$0xff]
    %v40 = vld [vmem:[#allocation2 + $0x58] sm:$0xff]
    %v41 = vld [vmem:[#allocation2 + $0x60] sm:$0xff]
    %v42 = vld [vmem:[#allocation2 + $0x68] sm:$0xff]
    %v43 = vld [vmem:[#allocation2 + $0x70] sm:$0xff]
    %v44 = vld [vmem:[#allocation2 + $0x78] sm:$0xff]
    %v45 = vld [vmem:[%s2] sm:$0xf]
    %v47 = vlaneseq
    %v48 = vshrl.u32 %v47, 7
    %v49 = vsub.s32 0, %v48
    %v50 = vrot.slane %v45, %v49
    %v51 = vlaneseq
    %v52 = vshrl.u32 %v51, 7
    %v53 = vsub.s32 1, %v52
    %v54 = vrot.slane %v45, %v53
    %v55 = vlaneseq
    %v56 = vshrl.u32 %v55, 7
    %v57 = vsub.s32 2, %v56
    %v58 = vrot.slane %v45, %v57
    %v59 = vlaneseq
    %v60 = vshrl.u32 %v59, 7
    %v61 = vsub.s32 3, %v60
    %v62 = vrot.slane %v45, %v61
    %vm67 = vcmask 261120
    %v69 = vsel %vm67, %v28, 0
    %v71 = vand.u32 %v30, 4294901760
    %72 = vmatprep.subr.mxu0 %v71
    %v73 = vand.u32 %v29, 4294901760
    %74 = vmatpush1.msra.mxu0 %v73
    %v75 = vand.u32 %v34, 4294901760
    %76 = vmatprep.subr.mxu0 %v75
    %v77 = vand.u32 %v33, 4294901760
    %78 = vmatpush1.msra.mxu0 %v77
    %v79 = vand.u32 %v38, 4294901760
    %80 = vmatprep.subr.mxu0 %v79
    %v81 = vand.u32 %v37, 4294901760
    %82 = vmatpush1.msra.mxu0 %v81
    %v83 = vand.u32 %v42, 4294901760
    %84 = vmatprep.subr.mxu0 %v83
    %v85 = vand.u32 %v41, 4294901760
    %86 = vmatpush1.msra.mxu0 %v85
    %87 = vmatprep.subr.mxu0 0.0
    %88 = vmatpush1.msra.mxu0 0.0
    %89 = vmatprep.subr.mxu0 0.0
    %90 = vmatpush1.msra.mxu0 0.0
    %91 = vmatprep.subr.mxu0 0.0
    %92 = vmatpush1.msra.mxu0 0.0
    %93 = vmatprep.subr.mxu0 0.0
    %94 = vmatpush1.msra.mxu0 0.0
    %95 = vmatprep.subr.mxu0 0.0
    %96 = vmatpush1.msra.mxu0 0.0
    %97 = vmatprep.subr.mxu0 0.0
    %98 = vmatpush1.msra.mxu0 0.0
    %99 = vmatprep.subr.mxu0 0.0
    %100 = vmatpush1.msra.mxu0 0.0
    %101 = vmatprep.subr.mxu0 0.0
    %102 = vmatpush1.msra.mxu0 0.0
    %103 = vmatprep.subr.mxu0 0.0
    %104 = vmatpush1.msra.mxu0 0.0
    %105 = vmatprep.subr.mxu0 0.0
    %106 = vmatpush1.msra.mxu0 0.0
    %107 = vmatprep.subr.mxu0 0.0
    %108 = vmatpush1.msra.mxu0 0.0
    %109 = vmatprep.subr.mxu0 0.0
    %110 = vmatpush1.msra.mxu0 0.0
    %111 = vmatprep.subr.mxu0 0.0
    %112 = vmatpush1.msra.mxu0 0.0
    %113 = vmatprep.subr.mxu0 0.0
    %114 = vmatpush1.msra.mxu0 0.0
    %115 = vmatprep.subr.mxu0 0.0
    %116 = vmatpush1.msra.mxu0 0.0
    %117 = vmatprep.subr.mxu0 0.0
    %118 = vmatpush1.msra.mxu0 0.0
    %119 = vmatprep.subr.mxu0 0.0
    %120 = vmatpush1.msra.mxu0 0.0
    %121 = vmatprep.subr.mxu0 0.0
    %122 = vmatpush1.msra.mxu0 0.0
    %123 = vmatprep.subr.mxu0 0.0
    %124 = vmatpush1.msra.mxu0 0.0
    %125 = vmatprep.subr.mxu0 0.0
    %126 = vmatpush1.msra.mxu0 0.0
    %127 = vmatprep.subr.mxu0 0.0
    %128 = vmatpush1.msra.mxu0 0.0
    %129 = vmatprep.subr.mxu0 0.0
    %130 = vmatpush1.msra.mxu0 0.0
    %131 = vmatprep.subr.mxu0 0.0
    %132 = vmatpush1.msra.mxu0 0.0
    %133 = vmatprep.subr.mxu0 0.0
    %134 = vmatpush1.msra.mxu0 0.0
    %135 = vmatprep.subr.mxu0 0.0
    %136 = vmatpush1.msra.mxu0 0.0
    %137 = vmatprep.subr.mxu0 0.0
    %138 = vmatpush1.msra.mxu0 0.0
    %139 = vmatprep.subr.mxu0 0.0
    %140 = vmatpush1.msra.mxu0 0.0
    %141 = vmatprep.subr.mxu0 0.0
    %142 = vmatpush1.msra.mxu0 0.0
    %143 = vmatprep.mubr.f32.mxu0 0.0
    %v144 = vand.u32 %v69, 4294901760
    %v145 = vsub.f32 %v69, %v144
    %v146 = vand.u32 %v145, 4294901760
    %v147 = vsub.f32 %v145, %v146
    %v148 = vand.u32 %v147, 4294901760
    %149 = vmatmul.mubr.f32.gmra.mrb[0].mxu0 %v148
    %v150 = vpop.f32.mrb[0].mxu0
    %v151 = vadd.f32 %v50, %v150
    %v152 = vpop.f32.mrb[0].mxu0
    %v153 = vadd.f32 %v54, %v152
    %154 = vdwg.mxu0
    %v155 = vand.u32 %v30, 4294901760
    %v156 = vsub.f32 %v30, %v155
    %v157 = vand.u32 %v156, 4294901760
    %v158 = vsub.f32 %v156, %v157
    %v159 = vand.u32 %v158, 4294901760
    %160 = vmatprep.subr.mxu0 %v159
    %v161 = vand.u32 %v29, 4294901760
    %v162 = vsub.f32 %v29, %v161
    %v163 = vand.u32 %v162, 4294901760
    %v164 = vsub.f32 %v162, %v163
    %v165 = vand.u32 %v164, 4294901760
    %166 = vmatpush1.msra.mxu0 %v165
    %v167 = vand.u32 %v34, 4294901760
    %v168 = vsub.f32 %v34, %v167
    %v169 = vand.u32 %v168, 4294901760
    %v170 = vsub.f32 %v168, %v169
    %v171 = vand.u32 %v170, 4294901760
    %172 = vmatprep.subr.mxu0 %v171
    %v173 = vand.u32 %v33, 4294901760
    %v174 = vsub.f32 %v33, %v173
    %v175 = vand.u32 %v174, 4294901760
    %v176 = vsub.f32 %v174, %v175
    %v177 = vand.u32 %v176, 4294901760
    %178 = vmatpush1.msra.mxu0 %v177
    %v179 = vand.u32 %v38, 4294901760
    %v180 = vsub.f32 %v38, %v179
    %v181 = vand.u32 %v180, 4294901760
    %v182 = vsub.f32 %v180, %v181
    %v183 = vand.u32 %v182, 4294901760
    %184 = vmatprep.subr.mxu0 %v183
    %v185 = vand.u32 %v37, 4294901760
    %v186 = vsub.f32 %v37, %v185
    %v187 = vand.u32 %v186, 4294901760
    %v188 = vsub.f32 %v186, %v187
    %v189 = vand.u32 %v188, 4294901760
    %190 = vmatpush1.msra.mxu0 %v189
    %v191 = vand.u32 %v42, 4294901760
    %v192 = vsub.f32 %v42, %v191
    %v193 = vand.u32 %v192, 4294901760
    %v194 = vsub.f32 %v192, %v193
    %v195 = vand.u32 %v194, 4294901760
    %196 = vmatprep.subr.mxu0 %v195
    %v197 = vand.u32 %v41, 4294901760
    %v198 = vsub.f32 %v41, %v197
    %v199 = vand.u32 %v198, 4294901760
    %v200 = vsub.f32 %v198, %v199
    %v201 = vand.u32 %v200, 4294901760
    %202 = vmatpush1.msra.mxu0 %v201
    %203 = vmatprep.subr.mxu0 0.0
    %204 = vmatpush1.msra.mxu0 0.0
    %205 = vmatprep.subr.mxu0 0.0
    %206 = vmatpush1.msra.mxu0 0.0
    %207 = vmatprep.subr.mxu0 0.0
    %208 = vmatpush1.msra.mxu0 0.0
    %209 = vmatprep.subr.mxu0 0.0
    %210 = vmatpush1.msra.mxu0 0.0
    %211 = vmatprep.subr.mxu0 0.0
    %212 = vmatpush1.msra.mxu0 0.0
    %213 = vmatprep.subr.mxu0 0.0
    %214 = vmatpush1.msra.mxu0 0.0
    %215 = vmatprep.subr.mxu0 0.0
    %216 = vmatpush1.msra.mxu0 0.0
    %217 = vmatprep.subr.mxu0 0.0
    %218 = vmatpush1.msra.mxu0 0.0
    %219 = vmatprep.subr.mxu0 0.0
    %220 = vmatpush1.msra.mxu0 0.0
    %221 = vmatprep.subr.mxu0 0.0
    %222 = vmatpush1.msra.mxu0 0.0
    %223 = vmatprep.subr.mxu0 0.0
    %224 = vmatpush1.msra.mxu0 0.0
    %225 = vmatprep.subr.mxu0 0.0
    %226 = vmatpush1.msra.mxu0 0.0
    %227 = vmatprep.subr.mxu0 0.0
    %228 = vmatpush1.msra.mxu0 0.0
    %229 = vmatprep.subr.mxu0 0.0
    %230 = vmatpush1.msra.mxu0 0.0
    %231 = vmatprep.subr.mxu0 0.0
    %232 = vmatpush1.msra.mxu0 0.0
    %233 = vmatprep.subr.mxu0 0.0
    %234 = vmatpush1.msra.mxu0 0.0
    %235 = vmatprep.subr.mxu0 0.0
    %236 = vmatpush1.msra.mxu0 0.0
    %237 = vmatprep.subr.mxu0 0.0
    %238 = vmatpush1.msra.mxu0 0.0
    %239 = vmatprep.subr.mxu0 0.0
    %240 = vmatpush1.msra.mxu0 0.0
    %241 = vmatprep.subr.mxu0 0.0
    %242 = vmatpush1.msra.mxu0 0.0
    %243 = vmatprep.subr.mxu0 0.0
    %244 = vmatpush1.msra.mxu0 0.0
    %245 = vmatprep.subr.mxu0 0.0
    %246 = vmatpush1.msra.mxu0 0.0
    %247 = vmatprep.subr.mxu0 0.0
    %248 = vmatpush1.msra.mxu0 0.0
    %249 = vmatprep.subr.mxu0 0.0
    %250 = vmatpush1.msra.mxu0 0.0
    %251 = vmatprep.subr.mxu0 0.0
    %252 = vmatpush1.msra.mxu0 0.0
    %253 = vmatprep.subr.mxu0 0.0
    %254 = vmatpush1.msra.mxu0 0.0
    %255 = vmatprep.subr.mxu0 0.0
    %256 = vmatpush1.msra.mxu0 0.0
    %257 = vmatprep.subr.mxu0 0.0
    %258 = vmatpush1.msra.mxu0 0.0
    %259 = vmatprep.mubr.f32.mxu0 0.0
    %v260 = vand.u32 %v69, 4294901760
    %261 = vmatmul.mubr.f32.gmra.mrb[0].mxu0 %v260
    %v262 = vpop.f32.mrb[0].mxu0
    %v263 = vadd.f32 %v151, %v262
    %v264 = vpop.f32.mrb[0].mxu0
    %v265 = vadd.f32 %v153, %v264
    %266 = vdwg.mxu0
    %v267 = vand.u32 %v30, 4294901760
    %v268 = vsub.f32 %v30, %v267
    %269 = vmatprep.subr.mxu0 %v268
    %v270 = vand.u32 %v29, 4294901760
    %v271 = vsub.f32 %v29, %v270
    %272 = vmatpush1.msra.mxu0 %v271
    %v273 = vand.u32 %v34, 4294901760
    %v274 = vsub.f32 %v34, %v273
    %275 = vmatprep.subr.mxu0 %v274
    %v276 = vand.u32 %v33, 4294901760
    %v277 = vsub.f32 %v33, %v276
    %278 = vmatpush1.msra.mxu0 %v277
    %v279 = vand.u32 %v38, 4294901760
    %v280 = vsub.f32 %v38, %v279
    %281 = vmatprep.subr.mxu0 %v280
    %v282 = vand.u32 %v37, 4294901760
    %v283 = vsub.f32 %v37, %v282
    %284 = vmatpush1.msra.mxu0 %v283
    %v285 = vand.u32 %v42, 4294901760
    %v286 = vsub.f32 %v42, %v285
    %287 = vmatprep.subr.mxu0 %v286
    %v288 = vand.u32 %v41, 4294901760
    %v289 = vsub.f32 %v41, %v288
    %290 = vmatpush1.msra.mxu0 %v289
    %291 = vmatprep.subr.mxu0 0.0
    %292 = vmatpush1.msra.mxu0 0.0
    %293 = vmatprep.subr.mxu0 0.0
    %294 = vmatpush1.msra.mxu0 0.0
    %295 = vmatprep.subr.mxu0 0.0
    %296 = vmatpush1.msra.mxu0 0.0
    %297 = vmatprep.subr.mxu0 0.0
    %298 = vmatpush1.msra.mxu0 0.0
    %299 = vmatprep.subr.mxu0 0.0
    %300 = vmatpush1.msra.mxu0 0.0
    %301 = vmatprep.subr.mxu0 0.0
    %302 = vmatpush1.msra.mxu0 0.0
    %303 = vmatprep.subr.mxu0 0.0
    %304 = vmatpush1.msra.mxu0 0.0
    %305 = vmatprep.subr.mxu0 0.0
    %306 = vmatpush1.msra.mxu0 0.0
    %307 = vmatprep.subr.mxu0 0.0
    %308 = vmatpush1.msra.mxu0 0.0
    %309 = vmatprep.subr.mxu0 0.0
    %310 = vmatpush1.msra.mxu0 0.0
    %311 = vmatprep.subr.mxu0 0.0
    %312 = vmatpush1.msra.mxu0 0.0
    %313 = vmatprep.subr.mxu0 0.0
    %314 = vmatpush1.msra.mxu0 0.0
    %315 = vmatprep.subr.mxu0 0.0
    %316 = vmatpush1.msra.mxu0 0.0
    %317 = vmatprep.subr.mxu0 0.0
    %318 = vmatpush1.msra.mxu0 0.0
    %319 = vmatprep.subr.mxu0 0.0
    %320 = vmatpush1.msra.mxu0 0.0
    %321 = vmatprep.subr.mxu0 0.0
    %322 = vmatpush1.msra.mxu0 0.0
    %323 = vmatprep.subr.mxu0 0.0
    %324 = vmatpush1.msra.mxu0 0.0
    %325 = vmatprep.subr.mxu0 0.0
    %326 = vmatpush1.msra.mxu0 0.0
    %327 = vmatprep.subr.mxu0 0.0
    %328 = vmatpush1.msra.mxu0 0.0
    %329 = vmatprep.subr.mxu0 0.0
    %330 = vmatpush1.msra.mxu0 0.0
    %331 = vmatprep.subr.mxu0 0.0
    %332 = vmatpush1.msra.mxu0 0.0
    %333 = vmatprep.subr.mxu0 0.0
    %334 = vmatpush1.msra.mxu0 0.0
    %335 = vmatprep.subr.mxu0 0.0
    %336 = vmatpush1.msra.mxu0 0.0
    %337 = vmatprep.subr.mxu0 0.0
    %338 = vmatpush1.msra.mxu0 0.0
    %339 = vmatprep.subr.mxu0 0.0
    %340 = vmatpush1.msra.mxu0 0.0
    %341 = vmatprep.subr.mxu0 0.0
    %342 = vmatpush1.msra.mxu0 0.0
    %343 = vmatprep.subr.mxu0 0.0
    %344 = vmatpush1.msra.mxu0 0.0
    %345 = vmatprep.subr.mxu0 0.0
    %346 = vmatpush1.msra.mxu0 0.0
    %347 = vmatprep.mubr.f32.mxu0 0.0
    %v348 = vand.u32 %v69, 4294901760
    %v349 = vsub.f32 %v69, %v348
    %350 = vmatmul.mubr.f32.gmra.mrb[0].mxu0 %v349
    %v351 = vpop.f32.mrb[0].mxu0
    %v352 = vadd.f32 %v263, %v351
    %v353 = vpop.f32.mrb[0].mxu0
    %v354 = vadd.f32 %v265, %v353
    %355 = vdwg.mxu0
    %v356 = vand.u32 %v30, 4294901760
    %357 = vmatprep.subr.mxu0 %v356
    %v358 = vand.u32 %v29, 4294901760
    %359 = vmatpush1.msra.mxu0 %v358
    %v360 = vand.u32 %v34, 4294901760
    %361 = vmatprep.subr.mxu0 %v360
    %v362 = vand.u32 %v33, 4294901760
    %363 = vmatpush1.msra.mxu0 %v362
    %v364 = vand.u32 %v38, 4294901760
    %365 = vmatprep.subr.mxu0 %v364
    %v366 = vand.u32 %v37, 4294901760
    %367 = vmatpush1.msra.mxu0 %v366
    %v368 = vand.u32 %v42, 4294901760
    %369 = vmatprep.subr.mxu0 %v368
    %v370 = vand.u32 %v41, 4294901760
    %371 = vmatpush1.msra.mxu0 %v370
    %372 = vmatprep.subr.mxu0 0.0
    %373 = vmatpush1.msra.mxu0 0.0
    %374 = vmatprep.subr.mxu0 0.0
    %375 = vmatpush1.msra.mxu0 0.0
    %376 = vmatprep.subr.mxu0 0.0
    %377 = vmatpush1.msra.mxu0 0.0
    %378 = vmatprep.subr.mxu0 0.0
    %379 = vmatpush1.msra.mxu0 0.0
    %380 = vmatprep.subr.mxu0 0.0
    %381 = vmatpush1.msra.mxu0 0.0
    %382 = vmatprep.subr.mxu0 0.0
    %383 = vmatpush1.msra.mxu0 0.0
    %384 = vmatprep.subr.mxu0 0.0
    %385 = vmatpush1.msra.mxu0 0.0
    %386 = vmatprep.subr.mxu0 0.0
    %387 = vmatpush1.msra.mxu0 0.0
    %388 = vmatprep.subr.mxu0 0.0
    %389 = vmatpush1.msra.mxu0 0.0
    %390 = vmatprep.subr.mxu0 0.0
    %391 = vmatpush1.msra.mxu0 0.0
    %392 = vmatprep.subr.mxu0 0.0
    %393 = vmatpush1.msra.mxu0 0.0
    %394 = vmatprep.subr.mxu0 0.0
    %395 = vmatpush1.msra.mxu0 0.0
    %396 = vmatprep.subr.mxu0 0.0
    %397 = vmatpush1.msra.mxu0 0.0
    %398 = vmatprep.subr.mxu0 0.0
    %399 = vmatpush1.msra.mxu0 0.0
    %400 = vmatprep.subr.mxu0 0.0
    %401 = vmatpush1.msra.mxu0 0.0
    %402 = vmatprep.subr.mxu0 0.0
    %403 = vmatpush1.msra.mxu0 0.0
    %404 = vmatprep.subr.mxu0 0.0
    %405 = vmatpush1.msra.mxu0 0.0
    %406 = vmatprep.subr.mxu0 0.0
    %407 = vmatpush1.msra.mxu0 0.0
    %408 = vmatprep.subr.mxu0 0.0
    %409 = vmatpush1.msra.mxu0 0.0
    %410 = vmatprep.subr.mxu0 0.0
    %411 = vmatpush1.msra.mxu0 0.0
    %412 = vmatprep.subr.mxu0 0.0
    %413 = vmatpush1.msra.mxu0 0.0
    %414 = vmatprep.subr.mxu0 0.0
    %415 = vmatpush1.msra.mxu0 0.0
    %416 = vmatprep.subr.mxu0 0.0
    %417 = vmatpush1.msra.mxu0 0.0
    %418 = vmatprep.subr.mxu0 0.0
    %419 = vmatpush1.msra.mxu0 0.0
    %420 = vmatprep.subr.mxu0 0.0
    %421 = vmatpush1.msra.mxu0 0.0
    %422 = vmatprep.subr.mxu0 0.0
    %423 = vmatpush1.msra.mxu0 0.0
    %424 = vmatprep.subr.mxu0 0.0
    %425 = vmatpush1.msra.mxu0 0.0
    %426 = vmatprep.subr.mxu0 0.0
    %427 = vmatpush1.msra.mxu0 0.0
    %428 = vmatprep.mubr.f32.mxu0 0.0
    %v429 = vand.u32 %v69, 4294901760
    %v430 = vsub.f32 %v69, %v429
    %v431 = vand.u32 %v430, 4294901760
    %432 = vmatmul.mubr.f32.gmra.mrb[0].mxu0 %v431
    %v433 = vpop.f32.mrb[0].mxu0
    %v434 = vadd.f32 %v352, %v433
    %v435 = vpop.f32.mrb[0].mxu0
    %v436 = vadd.f32 %v354, %v435
    %437 = vdwg.mxu0
    %v438 = vand.u32 %v30, 4294901760
    %v439 = vsub.f32 %v30, %v438
    %v440 = vand.u32 %v439, 4294901760
    %441 = vmatprep.subr.mxu0 %v440
    %v442 = vand.u32 %v29, 4294901760
    %v443 = vsub.f32 %v29, %v442
    %v444 = vand.u32 %v443, 4294901760
    %445 = vmatpush1.msra.mxu0 %v444
    %v446 = vand.u32 %v34, 4294901760
    %v447 = vsub.f32 %v34, %v446
    %v448 = vand.u32 %v447, 4294901760
    %449 = vmatprep.subr.mxu0 %v448
    %v450 = vand.u32 %v33, 4294901760
    %v451 = vsub.f32 %v33, %v450
    %v452 = vand.u32 %v451, 4294901760
    %453 = vmatpush1.msra.mxu0 %v452
    %v454 = vand.u32 %v38, 4294901760
    %v455 = vsub.f32 %v38, %v454
    %v456 = vand.u32 %v455, 4294901760
    %457 = vmatprep.subr.mxu0 %v456
    %v458 = vand.u32 %v37, 4294901760
    %v459 = vsub.f32 %v37, %v458
    %v460 = vand.u32 %v459, 4294901760
    %461 = vmatpush1.msra.mxu0 %v460
    %v462 = vand.u32 %v42, 4294901760
    %v463 = vsub.f32 %v42, %v462
    %v464 = vand.u32 %v463, 4294901760
    %465 = vmatprep.subr.mxu0 %v464
    %v466 = vand.u32 %v41, 4294901760
    %v467 = vsub.f32 %v41, %v466
    %v468 = vand.u32 %v467, 4294901760
    %469 = vmatpush1.msra.mxu0 %v468
    %470 = vmatprep.subr.mxu0 0.0
    %471 = vmatpush1.msra.mxu0 0.0
    %472 = vmatprep.subr.mxu0 0.0
    %473 = vmatpush1.msra.mxu0 0.0
    %474 = vmatprep.subr.mxu0 0.0
    %475 = vmatpush1.msra.mxu0 0.0
    %476 = vmatprep.subr.mxu0 0.0
    %477 = vmatpush1.msra.mxu0 0.0
    %478 = vmatprep.subr.mxu0 0.0
    %479 = vmatpush1.msra.mxu0 0.0
    %480 = vmatprep.subr.mxu0 0.0
    %481 = vmatpush1.msra.mxu0 0.0
    %482 = vmatprep.subr.mxu0 0.0
    %483 = vmatpush1.msra.mxu0 0.0
    %484 = vmatprep.subr.mxu0 0.0
    %485 = vmatpush1.msra.mxu0 0.0
    %486 = vmatprep.subr.mxu0 0.0
    %487 = vmatpush1.msra.mxu0 0.0
    %488 = vmatprep.subr.mxu0 0.0
    %489 = vmatpush1.msra.mxu0 0.0
    %490 = vmatprep.subr.mxu0 0.0
    %491 = vmatpush1.msra.mxu0 0.0
    %492 = vmatprep.subr.mxu0 0.0
    %493 = vmatpush1.msra.mxu0 0.0
    %494 = vmatprep.subr.mxu0 0.0
    %495 = vmatpush1.msra.mxu0 0.0
    %496 = vmatprep.subr.mxu0 0.0
    %497 = vmatpush1.msra.mxu0 0.0
    %498 = vmatprep.subr.mxu0 0.0
    %499 = vmatpush1.msra.mxu0 0.0
    %500 = vmatprep.subr.mxu0 0.0
    %501 = vmatpush1.msra.mxu0 0.0
    %502 = vmatprep.subr.mxu0 0.0
    %503 = vmatpush1.msra.mxu0 0.0
    %504 = vmatprep.subr.mxu0 0.0
    %505 = vmatpush1.msra.mxu0 0.0
    %506 = vmatprep.subr.mxu0 0.0
    %507 = vmatpush1.msra.mxu0 0.0
    %508 = vmatprep.subr.mxu0 0.0
    %509 = vmatpush1.msra.mxu0 0.0
    %510 = vmatprep.subr.mxu0 0.0
    %511 = vmatpush1.msra.mxu0 0.0
    %512 = vmatprep.subr.mxu0 0.0
    %513 = vmatpush1.msra.mxu0 0.0
    %514 = vmatprep.subr.mxu0 0.0
    %515 = vmatpush1.msra.mxu0 0.0
    %516 = vmatprep.subr.mxu0 0.0
    %517 = vmatpush1.msra.mxu0 0.0
    %518 = vmatprep.subr.mxu0 0.0
    %519 = vmatpush1.msra.mxu0 0.0
    %520 = vmatprep.subr.mxu0 0.0
    %521 = vmatpush1.msra.mxu0 0.0
    %522 = vmatprep.subr.mxu0 0.0
    %523 = vmatpush1.msra.mxu0 0.0
    %524 = vmatprep.subr.mxu0 0.0
    %525 = vmatpush1.msra.mxu0 0.0
    %526 = vmatprep.mubr.f32.mxu0 0.0
    %v527 = vand.u32 %v69, 4294901760
    %528 = vmatmul.mubr.f32.gmra.mrb[0].mxu0 %v527
    %v529 = vpop.f32.mrb[0].mxu0
    %v530 = vadd.f32 %v434, %v529
    %v531 = vpop.f32.mrb[0].mxu0
    %v532 = vadd.f32 %v436, %v531
    %533 = vdwg.mxu0
    %v534 = vand.u32 %v30, 4294901760
    %535 = vmatprep.subr.mxu0 %v534
    %v536 = vand.u32 %v29, 4294901760
    %537 = vmatpush1.msra.mxu0 %v536
    %v538 = vand.u32 %v34, 4294901760
    %539 = vmatprep.subr.mxu0 %v538
    %v540 = vand.u32 %v33, 4294901760
    %541 = vmatpush1.msra.mxu0 %v540
    %v542 = vand.u32 %v38, 4294901760
    %543 = vmatprep.subr.mxu0 %v542
    %v544 = vand.u32 %v37, 4294901760
    %545 = vmatpush1.msra.mxu0 %v544
    %v546 = vand.u32 %v42, 4294901760
    %547 = vmatprep.subr.mxu0 %v546
    %v548 = vand.u32 %v41, 4294901760
    %549 = vmatpush1.msra.mxu0 %v548
    %550 = vmatprep.subr.mxu0 0.0
    %551 = vmatpush1.msra.mxu0 0.0
    %552 = vmatprep.subr.mxu0 0.0
    %553 = vmatpush1.msra.mxu0 0.0
    %554 = vmatprep.subr.mxu0 0.0
    %555 = vmatpush1.msra.mxu0 0.0
    %556 = vmatprep.subr.mxu0 0.0
    %557 = vmatpush1.msra.mxu0 0.0
    %558 = vmatprep.subr.mxu0 0.0
    %559 = vmatpush1.msra.mxu0 0.0
    %560 = vmatprep.subr.mxu0 0.0
    %561 = vmatpush1.msra.mxu0 0.0
    %562 = vmatprep.subr.mxu0 0.0
    %563 = vmatpush1.msra.mxu0 0.0
    %564 = vmatprep.subr.mxu0 0.0
    %565 = vmatpush1.msra.mxu0 0.0
    %566 = vmatprep.subr.mxu0 0.0
    %567 = vmatpush1.msra.mxu0 0.0
    %568 = vmatprep.subr.mxu0 0.0
    %569 = vmatpush1.msra.mxu0 0.0
    %570 = vmatprep.subr.mxu0 0.0
    %571 = vmatpush1.msra.mxu0 0.0
    %572 = vmatprep.subr.mxu0 0.0
    %573 = vmatpush1.msra.mxu0 0.0
    %574 = vmatprep.subr.mxu0 0.0
    %575 = vmatpush1.msra.mxu0 0.0
    %576 = vmatprep.subr.mxu0 0.0
    %577 = vmatpush1.msra.mxu0 0.0
    %578 = vmatprep.subr.mxu0 0.0
    %579 = vmatpush1.msra.mxu0 0.0
    %580 = vmatprep.subr.mxu0 0.0
    %581 = vmatpush1.msra.mxu0 0.0
    %582 = vmatprep.subr.mxu0 0.0
    %583 = vmatpush1.msra.mxu0 0.0
    %584 = vmatprep.subr.mxu0 0.0
    %585 = vmatpush1.msra.mxu0 0.0
    %586 = vmatprep.subr.mxu0 0.0
    %587 = vmatpush1.msra.mxu0 0.0
    %588 = vmatprep.subr.mxu0 0.0
    %589 = vmatpush1.msra.mxu0 0.0
    %590 = vmatprep.subr.mxu0 0.0
    %591 = vmatpush1.msra.mxu0 0.0
    %592 = vmatprep.subr.mxu0 0.0
    %593 = vmatpush1.msra.mxu0 0.0
    %594 = vmatprep.subr.mxu0 0.0
    %595 = vmatpush1.msra.mxu0 0.0
    %596 = vmatprep.subr.mxu0 0.0
    %597 = vmatpush1.msra.mxu0 0.0
    %598 = vmatprep.subr.mxu0 0.0
    %599 = vmatpush1.msra.mxu0 0.0
    %600 = vmatprep.subr.mxu0 0.0
    %601 = vmatpush1.msra.mxu0 0.0
    %602 = vmatprep.subr.mxu0 0.0
    %603 = vmatpush1.msra.mxu0 0.0
    %604 = vmatprep.subr.mxu0 0.0
    %605 = vmatpush1.msra.mxu0 0.0
    %606 = vmatprep.mubr.f32.mxu0 0.0
    %v607 = vand.u32 %v69, 4294901760
    %608 = vmatmul.mubr.f32.gmra.mrb[0].mxu0 %v607
    %v609 = vpop.f32.mrb[0].mxu0
    %v610 = vadd.f32 %v530, %v609
    %v611 = vpop.f32.mrb[0].mxu0
    %v612 = vadd.f32 %v532, %v611
    %613 = vdwg.mxu0
    %v614 = vand.u32 %v32, 4294901760
    %615 = vmatprep.subr.mxu0 %v614
    %v616 = vand.u32 %v31, 4294901760
    %617 = vmatpush1.msra.mxu0 %v616
    %v618 = vand.u32 %v36, 4294901760
    %619 = vmatprep.subr.mxu0 %v618
    %v620 = vand.u32 %v35, 4294901760
    %621 = vmatpush1.msra.mxu0 %v620
    %v622 = vand.u32 %v40, 4294901760
    %623 = vmatprep.subr.mxu0 %v622
    %v624 = vand.u32 %v39, 4294901760
    %625 = vmatpush1.msra.mxu0 %v624
    %v626 = vand.u32 %v44, 4294901760
    %627 = vmatprep.subr.mxu0 %v626
    %v628 = vand.u32 %v43, 4294901760
    %629 = vmatpush1.msra.mxu0 %v628
    %630 = vmatprep.subr.mxu0 0.0
    %631 = vmatpush1.msra.mxu0 0.0
    %632 = vmatprep.subr.mxu0 0.0
    %633 = vmatpush1.msra.mxu0 0.0
    %634 = vmatprep.subr.mxu0 0.0
    %635 = vmatpush1.msra.mxu0 0.0
    %636 = vmatprep.subr.mxu0 0.0
    %637 = vmatpush1.msra.mxu0 0.0
    %638 = vmatprep.subr.mxu0 0.0
    %639 = vmatpush1.msra.mxu0 0.0
    %640 = vmatprep.subr.mxu0 0.0
    %641 = vmatpush1.msra.mxu0 0.0
    %642 = vmatprep.subr.mxu0 0.0
    %643 = vmatpush1.msra.mxu0 0.0
    %644 = vmatprep.subr.mxu0 0.0
    %645 = vmatpush1.msra.mxu0 0.0
    %646 = vmatprep.subr.mxu0 0.0
    %647 = vmatpush1.msra.mxu0 0.0
    %648 = vmatprep.subr.mxu0 0.0
    %649 = vmatpush1.msra.mxu0 0.0
    %650 = vmatprep.subr.mxu0 0.0
    %651 = vmatpush1.msra.mxu0 0.0
    %652 = vmatprep.subr.mxu0 0.0
    %653 = vmatpush1.msra.mxu0 0.0
    %654 = vmatprep.subr.mxu0 0.0
    %655 = vmatpush1.msra.mxu0 0.0
    %656 = vmatprep.subr.mxu0 0.0
    %657 = vmatpush1.msra.mxu0 0.0
    %658 = vmatprep.subr.mxu0 0.0
    %659 = vmatpush1.msra.mxu0 0.0
    %660 = vmatprep.subr.mxu0 0.0
    %661 = vmatpush1.msra.mxu0 0.0
    %662 = vmatprep.subr.mxu0 0.0
    %663 = vmatpush1.msra.mxu0 0.0
    %664 = vmatprep.subr.mxu0 0.0
    %665 = vmatpush1.msra.mxu0 0.0
    %666 = vmatprep.subr.mxu0 0.0
    %667 = vmatpush1.msra.mxu0 0.0
    %668 = vmatprep.subr.mxu0 0.0
    %669 = vmatpush1.msra.mxu0 0.0
    %670 = vmatprep.subr.mxu0 0.0
    %671 = vmatpush1.msra.mxu0 0.0
    %672 = vmatprep.subr.mxu0 0.0
    %673 = vmatpush1.msra.mxu0 0.0
    %674 = vmatprep.subr.mxu0 0.0
    %675 = vmatpush1.msra.mxu0 0.0
    %676 = vmatprep.subr.mxu0 0.0
    %677 = vmatpush1.msra.mxu0 0.0
    %678 = vmatprep.subr.mxu0 0.0
    %679 = vmatpush1.msra.mxu0 0.0
    %680 = vmatprep.subr.mxu0 0.0
    %681 = vmatpush1.msra.mxu0 0.0
    %682 = vmatprep.subr.mxu0 0.0
    %683 = vmatpush1.msra.mxu0 0.0
    %684 = vmatprep.subr.mxu0 0.0
    %685 = vmatpush1.msra.mxu0 0.0
    %686 = vmatprep.mubr.f32.mxu0 0.0
    %v687 = vand.u32 %v69, 4294901760
    %v688 = vsub.f32 %v69, %v687
    %v689 = vand.u32 %v688, 4294901760
    %v690 = vsub.f32 %v688, %v689
    %v691 = vand.u32 %v690, 4294901760
    %692 = vmatmul.mubr.f32.gmra.mrb[0].mxu0 %v691
    %v693 = vpop.f32.mrb[0].mxu0
    %v694 = vadd.f32 %v58, %v693
    %v695 = vpop.f32.mrb[0].mxu0
    %v696 = vadd.f32 %v62, %v695
    %697 = vdwg.mxu0
    %v698 = vand.u32 %v32, 4294901760
    %v699 = vsub.f32 %v32, %v698
    %v700 = vand.u32 %v699, 4294901760
    %v701 = vsub.f32 %v699, %v700
    %v702 = vand.u32 %v701, 4294901760
    %703 = vmatprep.subr.mxu0 %v702
    %v704 = vand.u32 %v31, 4294901760
    %v705 = vsub.f32 %v31, %v704
    %v706 = vand.u32 %v705, 4294901760
    %v707 = vsub.f32 %v705, %v706
    %v708 = vand.u32 %v707, 4294901760
    %709 = vmatpush1.msra.mxu0 %v708
    %v710 = vand.u32 %v36, 4294901760
    %v711 = vsub.f32 %v36, %v710
    %v712 = vand.u32 %v711, 4294901760
    %v713 = vsub.f32 %v711, %v712
    %v714 = vand.u32 %v713, 4294901760
    %715 = vmatprep.subr.mxu0 %v714
    %v716 = vand.u32 %v35, 4294901760
    %v717 = vsub.f32 %v35, %v716
    %v718 = vand.u32 %v717, 4294901760
    %v719 = vsub.f32 %v717, %v718
    %v720 = vand.u32 %v719, 4294901760
    %721 = vmatpush1.msra.mxu0 %v720
    %v722 = vand.u32 %v40, 4294901760
    %v723 = vsub.f32 %v40, %v722
    %v724 = vand.u32 %v723, 4294901760
    %v725 = vsub.f32 %v723, %v724
    %v726 = vand.u32 %v725, 4294901760
    %727 = vmatprep.subr.mxu0 %v726
    %v728 = vand.u32 %v39, 4294901760
    %v729 = vsub.f32 %v39, %v728
    %v730 = vand.u32 %v729, 4294901760
    %v731 = vsub.f32 %v729, %v730
    %v732 = vand.u32 %v731, 4294901760
    %733 = vmatpush1.msra.mxu0 %v732
    %v734 = vand.u32 %v44, 4294901760
    %v735 = vsub.f32 %v44, %v734
    %v736 = vand.u32 %v735, 4294901760
    %v737 = vsub.f32 %v735, %v736
    %v738 = vand.u32 %v737, 4294901760
    %739 = vmatprep.subr.mxu0 %v738
    %v740 = vand.u32 %v43, 4294901760
    %v741 = vsub.f32 %v43, %v740
    %v742 = vand.u32 %v741, 4294901760
    %v743 = vsub.f32 %v741, %v742
    %v744 = vand.u32 %v743, 4294901760
    %745 = vmatpush1.msra.mxu0 %v744
    %746 = vmatprep.subr.mxu0 0.0
    %747 = vmatpush1.msra.mxu0 0.0
    %748 = vmatprep.subr.mxu0 0.0
    %749 = vmatpush1.msra.mxu0 0.0
    %750 = vmatprep.subr.mxu0 0.0
    %751 = vmatpush1.msra.mxu0 0.0
    %752 = vmatprep.subr.mxu0 0.0
    %753 = vmatpush1.msra.mxu0 0.0
    %754 = vmatprep.subr.mxu0 0.0
    %755 = vmatpush1.msra.mxu0 0.0
    %756 = vmatprep.subr.mxu0 0.0
    %757 = vmatpush1.msra.mxu0 0.0
    %758 = vmatprep.subr.mxu0 0.0
    %759 = vmatpush1.msra.mxu0 0.0
    %760 = vmatprep.subr.mxu0 0.0
    %761 = vmatpush1.msra.mxu0 0.0
    %762 = vmatprep.subr.mxu0 0.0
    %763 = vmatpush1.msra.mxu0 0.0
    %764 = vmatprep.subr.mxu0 0.0
    %765 = vmatpush1.msra.mxu0 0.0
    %766 = vmatprep.subr.mxu0 0.0
    %767 = vmatpush1.msra.mxu0 0.0
    %768 = vmatprep.subr.mxu0 0.0
    %769 = vmatpush1.msra.mxu0 0.0
    %770 = vmatprep.subr.mxu0 0.0
    %771 = vmatpush1.msra.mxu0 0.0
    %772 = vmatprep.subr.mxu0 0.0
    %773 = vmatpush1.msra.mxu0 0.0
    %774 = vmatprep.subr.mxu0 0.0
    %775 = vmatpush1.msra.mxu0 0.0
    %776 = vmatprep.subr.mxu0 0.0
    %777 = vmatpush1.msra.mxu0 0.0
    %778 = vmatprep.subr.mxu0 0.0
    %779 = vmatpush1.msra.mxu0 0.0
    %780 = vmatprep.subr.mxu0 0.0
    %781 = vmatpush1.msra.mxu0 0.0
    %782 = vmatprep.subr.mxu0 0.0
    %783 = vmatpush1.msra.mxu0 0.0
    %784 = vmatprep.subr.mxu0 0.0
    %785 = vmatpush1.msra.mxu0 0.0
    %786 = vmatprep.subr.mxu0 0.0
    %787 = vmatpush1.msra.mxu0 0.0
    %788 = vmatprep.subr.mxu0 0.0
    %789 = vmatpush1.msra.mxu0 0.0
    %790 = vmatprep.subr.mxu0 0.0
    %791 = vmatpush1.msra.mxu0 0.0
    %792 = vmatprep.subr.mxu0 0.0
    %793 = vmatpush1.msra.mxu0 0.0
    %794 = vmatprep.subr.mxu0 0.0
    %795 = vmatpush1.msra.mxu0 0.0
    %796 = vmatprep.subr.mxu0 0.0
    %797 = vmatpush1.msra.mxu0 0.0
    %798 = vmatprep.subr.mxu0 0.0
    %799 = vmatpush1.msra.mxu0 0.0
    %800 = vmatprep.subr.mxu0 0.0
    %801 = vmatpush1.msra.mxu0 0.0
    %802 = vmatprep.mubr.f32.mxu0 0.0
    %v803 = vand.u32 %v69, 4294901760
    %804 = vmatmul.mubr.f32.gmra.mrb[0].mxu0 %v803
    %v805 = vpop.f32.mrb[0].mxu0
    %v806 = vadd.f32 %v694, %v805
    %v807 = vpop.f32.mrb[0].mxu0
    %v808 = vadd.f32 %v696, %v807
    %809 = vdwg.mxu0
    %v810 = vand.u32 %v32, 4294901760
    %v811 = vsub.f32 %v32, %v810
    %812 = vmatprep.subr.mxu0 %v811
    %v813 = vand.u32 %v31, 4294901760
    %v814 = vsub.f32 %v31, %v813
    %815 = vmatpush1.msra.mxu0 %v814
    %v816 = vand.u32 %v36, 4294901760
    %v817 = vsub.f32 %v36, %v816
    %818 = vmatprep.subr.mxu0 %v817
    %v819 = vand.u32 %v35, 4294901760
    %v820 = vsub.f32 %v35, %v819
    %821 = vmatpush1.msra.mxu0 %v820
    %v822 = vand.u32 %v40, 4294901760
    %v823 = vsub.f32 %v40, %v822
    %824 = vmatprep.subr.mxu0 %v823
    %v825 = vand.u32 %v39, 4294901760
    %v826 = vsub.f32 %v39, %v825
    %827 = vmatpush1.msra.mxu0 %v826
    %v828 = vand.u32 %v44, 4294901760
    %v829 = vsub.f32 %v44, %v828
    %830 = vmatprep.subr.mxu0 %v829
    %v831 = vand.u32 %v43, 4294901760
    %v832 = vsub.f32 %v43, %v831
    %833 = vmatpush1.msra.mxu0 %v832
    %834 = vmatprep.subr.mxu0 0.0
    %835 = vmatpush1.msra.mxu0 0.0
    %836 = vmatprep.subr.mxu0 0.0
    %837 = vmatpush1.msra.mxu0 0.0
    %838 = vmatprep.subr.mxu0 0.0
    %839 = vmatpush1.msra.mxu0 0.0
    %840 = vmatprep.subr.mxu0 0.0
    %841 = vmatpush1.msra.mxu0 0.0
    %842 = vmatprep.subr.mxu0 0.0
    %843 = vmatpush1.msra.mxu0 0.0
    %844 = vmatprep.subr.mxu0 0.0
    %845 = vmatpush1.msra.mxu0 0.0
    %846 = vmatprep.subr.mxu0 0.0
    %847 = vmatpush1.msra.mxu0 0.0
    %848 = vmatprep.subr.mxu0 0.0
    %849 = vmatpush1.msra.mxu0 0.0
    %850 = vmatprep.subr.mxu0 0.0
    %851 = vmatpush1.msra.mxu0 0.0
    %852 = vmatprep.subr.mxu0 0.0
    %853 = vmatpush1.msra.mxu0 0.0
    %854 = vmatprep.subr.mxu0 0.0
    %855 = vmatpush1.msra.mxu0 0.0
    %856 = vmatprep.subr.mxu0 0.0
    %857 = vmatpush1.msra.mxu0 0.0
    %858 = vmatprep.subr.mxu0 0.0
    %859 = vmatpush1.msra.mxu0 0.0
    %860 = vmatprep.subr.mxu0 0.0
    %861 = vmatpush1.msra.mxu0 0.0
    %862 = vmatprep.subr.mxu0 0.0
    %863 = vmatpush1.msra.mxu0 0.0
    %864 = vmatprep.subr.mxu0 0.0
    %865 = vmatpush1.msra.mxu0 0.0
    %866 = vmatprep.subr.mxu0 0.0
    %867 = vmatpush1.msra.mxu0 0.0
    %868 = vmatprep.subr.mxu0 0.0
    %869 = vmatpush1.msra.mxu0 0.0
    %870 = vmatprep.subr.mxu0 0.0
    %871 = vmatpush1.msra.mxu0 0.0
    %872 = vmatprep.subr.mxu0 0.0
    %873 = vmatpush1.msra.mxu0 0.0
    %874 = vmatprep.subr.mxu0 0.0
    %875 = vmatpush1.msra.mxu0 0.0
    %876 = vmatprep.subr.mxu0 0.0
    %877 = vmatpush1.msra.mxu0 0.0
    %878 = vmatprep.subr.mxu0 0.0
    %879 = vmatpush1.msra.mxu0 0.0
    %880 = vmatprep.subr.mxu0 0.0
    %881 = vmatpush1.msra.mxu0 0.0
    %882 = vmatprep.subr.mxu0 0.0
    %883 = vmatpush1.msra.mxu0 0.0
    %884 = vmatprep.subr.mxu0 0.0
    %885 = vmatpush1.msra.mxu0 0.0
    %886 = vmatprep.subr.mxu0 0.0
    %887 = vmatpush1.msra.mxu0 0.0
    %888 = vmatprep.subr.mxu0 0.0
    %889 = vmatpush1.msra.mxu0 0.0
    %890 = vmatprep.mubr.f32.mxu0 0.0
    %v891 = vand.u32 %v69, 4294901760
    %v892 = vsub.f32 %v69, %v891
    %893 = vmatmul.mubr.f32.gmra.mrb[0].mxu0 %v892
    %v894 = vpop.f32.mrb[0].mxu0
    %v895 = vadd.f32 %v806, %v894
    %v896 = vpop.f32.mrb[0].mxu0
    %v897 = vadd.f32 %v808, %v896
    %898 = vdwg.mxu0
    %v899 = vand.u32 %v32, 4294901760
    %900 = vmatprep.subr.mxu0 %v899
    %v901 = vand.u32 %v31, 4294901760
    %902 = vmatpush1.msra.mxu0 %v901
    %v903 = vand.u32 %v36, 4294901760
    %904 = vmatprep.subr.mxu0 %v903
    %v905 = vand.u32 %v35, 4294901760
    %906 = vmatpush1.msra.mxu0 %v905
    %v907 = vand.u32 %v40, 4294901760
    %908 = vmatprep.subr.mxu0 %v907
    %v909 = vand.u32 %v39, 4294901760
    %910 = vmatpush1.msra.mxu0 %v909
    %v911 = vand.u32 %v44, 4294901760
    %912 = vmatprep.subr.mxu0 %v911
    %v913 = vand.u32 %v43, 4294901760
    %914 = vmatpush1.msra.mxu0 %v913
    %915 = vmatprep.subr.mxu0 0.0
    %916 = vmatpush1.msra.mxu0 0.0
    %917 = vmatprep.subr.mxu0 0.0
    %918 = vmatpush1.msra.mxu0 0.0
    %919 = vmatprep.subr.mxu0 0.0
    %920 = vmatpush1.msra.mxu0 0.0
    %921 = vmatprep.subr.mxu0 0.0
    %922 = vmatpush1.msra.mxu0 0.0
    %923 = vmatprep.subr.mxu0 0.0
    %924 = vmatpush1.msra.mxu0 0.0
    %925 = vmatprep.subr.mxu0 0.0
    %926 = vmatpush1.msra.mxu0 0.0
    %927 = vmatprep.subr.mxu0 0.0
    %928 = vmatpush1.msra.mxu0 0.0
    %929 = vmatprep.subr.mxu0 0.0
    %930 = vmatpush1.msra.mxu0 0.0
    %931 = vmatprep.subr.mxu0 0.0
    %932 = vmatpush1.msra.mxu0 0.0
    %933 = vmatprep.subr.mxu0 0.0
    %934 = vmatpush1.msra.mxu0 0.0
    %935 = vmatprep.subr.mxu0 0.0
    %936 = vmatpush1.msra.mxu0 0.0
    %937 = vmatprep.subr.mxu0 0.0
    %938 = vmatpush1.msra.mxu0 0.0
    %939 = vmatprep.subr.mxu0 0.0
    %940 = vmatpush1.msra.mxu0 0.0
    %941 = vmatprep.subr.mxu0 0.0
    %942 = vmatpush1.msra.mxu0 0.0
    %943 = vmatprep.subr.mxu0 0.0
    %944 = vmatpush1.msra.mxu0 0.0
    %945 = vmatprep.subr.mxu0 0.0
    %946 = vmatpush1.msra.mxu0 0.0
    %947 = vmatprep.subr.mxu0 0.0
    %948 = vmatpush1.msra.mxu0 0.0
    %949 = vmatprep.subr.mxu0 0.0
    %950 = vmatpush1.msra.mxu0 0.0
    %951 = vmatprep.subr.mxu0 0.0
    %952 = vmatpush1.msra.mxu0 0.0
    %953 = vmatprep.subr.mxu0 0.0
    %954 = vmatpush1.msra.mxu0 0.0
    %955 = vmatprep.subr.mxu0 0.0
    %956 = vmatpush1.msra.mxu0 0.0
    %957 = vmatprep.subr.mxu0 0.0
    %958 = vmatpush1.msra.mxu0 0.0
    %959 = vmatprep.subr.mxu0 0.0
    %960 = vmatpush1.msra.mxu0 0.0
    %961 = vmatprep.subr.mxu0 0.0
    %962 = vmatpush1.msra.mxu0 0.0
    %963 = vmatprep.subr.mxu0 0.0
    %964 = vmatpush1.msra.mxu0 0.0
    %965 = vmatprep.subr.mxu0 0.0
    %966 = vmatpush1.msra.mxu0 0.0
    %967 = vmatprep.subr.mxu0 0.0
    %968 = vmatpush1.msra.mxu0 0.0
    %969 = vmatprep.subr.mxu0 0.0
    %970 = vmatpush1.msra.mxu0 0.0
    %971 = vmatprep.mubr.f32.mxu0 0.0
    %v972 = vand.u32 %v69, 4294901760
    %v973 = vsub.f32 %v69, %v972
    %v974 = vand.u32 %v973, 4294901760
    %975 = vmatmul.mubr.f32.gmra.mrb[0].mxu0 %v974
    %v976 = vpop.f32.mrb[0].mxu0
    %v977 = vadd.f32 %v895, %v976
    %v978 = vpop.f32.mrb[0].mxu0
    %v979 = vadd.f32 %v897, %v978
    %980 = vdwg.mxu0
    %v981 = vand.u32 %v32, 4294901760
    %v982 = vsub.f32 %v32, %v981
    %v983 = vand.u32 %v982, 4294901760
    %984 = vmatprep.subr.mxu0 %v983
    %v985 = vand.u32 %v31, 4294901760
    %v986 = vsub.f32 %v31, %v985
    %v987 = vand.u32 %v986, 4294901760
    %988 = vmatpush1.msra.mxu0 %v987
    %v989 = vand.u32 %v36, 4294901760
    %v990 = vsub.f32 %v36, %v989
    %v991 = vand.u32 %v990, 4294901760
    %992 = vmatprep.subr.mxu0 %v991
    %v993 = vand.u32 %v35, 4294901760
    %v994 = vsub.f32 %v35, %v993
    %v995 = vand.u32 %v994, 4294901760
    %996 = vmatpush1.msra.mxu0 %v995
    %v997 = vand.u32 %v40, 4294901760
    %v998 = vsub.f32 %v40, %v997
    %v999 = vand.u32 %v998, 4294901760
    %1000 = vmatprep.subr.mxu0 %v999
    %v1001 = vand.u32 %v39, 4294901760
    %v1002 = vsub.f32 %v39, %v1001
    %v1003 = vand.u32 %v1002, 4294901760
    %1004 = vmatpush1.msra.mxu0 %v1003
    %v1005 = vand.u32 %v44, 4294901760
    %v1006 = vsub.f32 %v44, %v1005
    %v1007 = vand.u32 %v1006, 4294901760
    %1008 = vmatprep.subr.mxu0 %v1007
    %v1009 = vand.u32 %v43, 4294901760
    %v1010 = vsub.f32 %v43, %v1009
    %v1011 = vand.u32 %v1010, 4294901760
    %1012 = vmatpush1.msra.mxu0 %v1011
    %1013 = vmatprep.subr.mxu0 0.0
    %1014 = vmatpush1.msra.mxu0 0.0
    %1015 = vmatprep.subr.mxu0 0.0
    %1016 = vmatpush1.msra.mxu0 0.0
    %1017 = vmatprep.subr.mxu0 0.0
    %1018 = vmatpush1.msra.mxu0 0.0
    %1019 = vmatprep.subr.mxu0 0.0
    %1020 = vmatpush1.msra.mxu0 0.0
    %1021 = vmatprep.subr.mxu0 0.0
    %1022 = vmatpush1.msra.mxu0 0.0
    %1023 = vmatprep.subr.mxu0 0.0
    %1024 = vmatpush1.msra.mxu0 0.0
    %1025 = vmatprep.subr.mxu0 0.0
    %1026 = vmatpush1.msra.mxu0 0.0
    %1027 = vmatprep.subr.mxu0 0.0
    %1028 = vmatpush1.msra.mxu0 0.0
    %1029 = vmatprep.subr.mxu0 0.0
    %1030 = vmatpush1.msra.mxu0 0.0
    %1031 = vmatprep.subr.mxu0 0.0
    %1032 = vmatpush1.msra.mxu0 0.0
    %1033 = vmatprep.subr.mxu0 0.0
    %1034 = vmatpush1.msra.mxu0 0.0
    %1035 = vmatprep.subr.mxu0 0.0
    %1036 = vmatpush1.msra.mxu0 0.0
    %1037 = vmatprep.subr.mxu0 0.0
    %1038 = vmatpush1.msra.mxu0 0.0
    %1039 = vmatprep.subr.mxu0 0.0
    %1040 = vmatpush1.msra.mxu0 0.0
    %1041 = vmatprep.subr.mxu0 0.0
    %1042 = vmatpush1.msra.mxu0 0.0
    %1043 = vmatprep.subr.mxu0 0.0
    %1044 = vmatpush1.msra.mxu0 0.0
    %1045 = vmatprep.subr.mxu0 0.0
    %1046 = vmatpush1.msra.mxu0 0.0
    %1047 = vmatprep.subr.mxu0 0.0
    %1048 = vmatpush1.msra.mxu0 0.0
    %1049 = vmatprep.subr.mxu0 0.0
    %1050 = vmatpush1.msra.mxu0 0.0
    %1051 = vmatprep.subr.mxu0 0.0
    %1052 = vmatpush1.msra.mxu0 0.0
    %1053 = vmatprep.subr.mxu0 0.0
    %1054 = vmatpush1.msra.mxu0 0.0
    %1055 = vmatprep.subr.mxu0 0.0
    %1056 = vmatpush1.msra.mxu0 0.0
    %1057 = vmatprep.subr.mxu0 0.0
    %1058 = vmatpush1.msra.mxu0 0.0
    %1059 = vmatprep.subr.mxu0 0.0
    %1060 = vmatpush1.msra.mxu0 0.0
    %1061 = vmatprep.subr.mxu0 0.0
    %1062 = vmatpush1.msra.mxu0 0.0
    %1063 = vmatprep.subr.mxu0 0.0
    %1064 = vmatpush1.msra.mxu0 0.0
    %1065 = vmatprep.subr.mxu0 0.0
    %1066 = vmatpush1.msra.mxu0 0.0
    %1067 = vmatprep.subr.mxu0 0.0
    %1068 = vmatpush1.msra.mxu0 0.0
    %1069 = vmatprep.mubr.f32.mxu0 0.0
    %v1070 = vand.u32 %v69, 4294901760
    %1071 = vmatmul.mubr.f32.gmra.mrb[0].mxu0 %v1070
    %v1072 = vpop.f32.mrb[0].mxu0
    %v1073 = vadd.f32 %v977, %v1072
    %v1074 = vpop.f32.mrb[0].mxu0
    %v1075 = vadd.f32 %v979, %v1074
    %1076 = vdwg.mxu0
    %v1077 = vand.u32 %v32, 4294901760
    %1078 = vmatprep.subr.mxu0 %v1077
    %v1079 = vand.u32 %v31, 4294901760
    %1080 = vmatpush1.msra.mxu0 %v1079
    %v1081 = vand.u32 %v36, 4294901760
    %1082 = vmatprep.subr.mxu0 %v1081
    %v1083 = vand.u32 %v35, 4294901760
    %1084 = vmatpush1.msra.mxu0 %v1083
    %v1085 = vand.u32 %v40, 4294901760
    %1086 = vmatprep.subr.mxu0 %v1085
    %v1087 = vand.u32 %v39, 4294901760
    %1088 = vmatpush1.msra.mxu0 %v1087
    %v1089 = vand.u32 %v44, 4294901760
    %1090 = vmatprep.subr.mxu0 %v1089
    %v1091 = vand.u32 %v43, 4294901760
    %1092 = vmatpush1.msra.mxu0 %v1091
    %1093 = vmatprep.subr.mxu0 0.0
    %1094 = vmatpush1.msra.mxu0 0.0
    %1095 = vmatprep.subr.mxu0 0.0
    %1096 = vmatpush1.msra.mxu0 0.0
    %1097 = vmatprep.subr.mxu0 0.0
    %1098 = vmatpush1.msra.mxu0 0.0
    %1099 = vmatprep.subr.mxu0 0.0
    %1100 = vmatpush1.msra.mxu0 0.0
    %1101 = vmatprep.subr.mxu0 0.0
    %1102 = vmatpush1.msra.mxu0 0.0
    %1103 = vmatprep.subr.mxu0 0.0
    %1104 = vmatpush1.msra.mxu0 0.0
    %1105 = vmatprep.subr.mxu0 0.0
    %1106 = vmatpush1.msra.mxu0 0.0
    %1107 = vmatprep.subr.mxu0 0.0
    %1108 = vmatpush1.msra.mxu0 0.0
    %1109 = vmatprep.subr.mxu0 0.0
    %1110 = vmatpush1.msra.mxu0 0.0
    %1111 = vmatprep.subr.mxu0 0.0
    %1112 = vmatpush1.msra.mxu0 0.0
    %1113 = vmatprep.subr.mxu0 0.0
    %1114 = vmatpush1.msra.mxu0 0.0
    %1115 = vmatprep.subr.mxu0 0.0
    %1116 = vmatpush1.msra.mxu0 0.0
    %1117 = vmatprep.subr.mxu0 0.0
    %1118 = vmatpush1.msra.mxu0 0.0
    %1119 = vmatprep.subr.mxu0 0.0
    %1120 = vmatpush1.msra.mxu0 0.0
    %1121 = vmatprep.subr.mxu0 0.0
    %1122 = vmatpush1.msra.mxu0 0.0
    %1123 = vmatprep.subr.mxu0 0.0
    %1124 = vmatpush1.msra.mxu0 0.0
    %1125 = vmatprep.subr.mxu0 0.0
    %1126 = vmatpush1.msra.mxu0 0.0
    %1127 = vmatprep.subr.mxu0 0.0
    %1128 = vmatpush1.msra.mxu0 0.0
    %1129 = vmatprep.subr.mxu0 0.0
    %1130 = vmatpush1.msra.mxu0 0.0
    %1131 = vmatprep.subr.mxu0 0.0
    %1132 = vmatpush1.msra.mxu0 0.0
    %1133 = vmatprep.subr.mxu0 0.0
    %1134 = vmatpush1.msra.mxu0 0.0
    %1135 = vmatprep.subr.mxu0 0.0
    %1136 = vmatpush1.msra.mxu0 0.0
    %1137 = vmatprep.subr.mxu0 0.0
    %1138 = vmatpush1.msra.mxu0 0.0
    %1139 = vmatprep.subr.mxu0 0.0
    %1140 = vmatpush1.msra.mxu0 0.0
    %1141 = vmatprep.subr.mxu0 0.0
    %1142 = vmatpush1.msra.mxu0 0.0
    %1143 = vmatprep.subr.mxu0 0.0
    %1144 = vmatpush1.msra.mxu0 0.0
    %1145 = vmatprep.subr.mxu0 0.0
    %1146 = vmatpush1.msra.mxu0 0.0
    %1147 = vmatprep.subr.mxu0 0.0
    %1148 = vmatpush1.msra.mxu0 0.0
    %1149 = vmatprep.mubr.f32.mxu0 0.0
    %v1150 = vand.u32 %v69, 4294901760
    %1151 = vmatmul.mubr.f32.gmra.mrb[0].mxu0 %v1150
    %v1152 = vpop.f32.mrb[0].mxu0
    %v1153 = vadd.f32 %v1073, %v1152
    %v1154 = vpop.f32.mrb[0].mxu0
    %v1155 = vadd.f32 %v1075, %v1154
    %1156 = vdwg.mxu0
    %vm1157 = vcmp.gt.f32.partialorder %v610, 0.0
    %vm1158 = vcmp.gt.f32.partialorder %v612, 0.0
    %vm1159 = vcmp.gt.f32.partialorder %v1153, 0.0
    %vm1160 = vcmp.gt.f32.partialorder %v1155, 0.0
    %v1161 = vmul.f32 %v610, 0.1
    %v1162 = vmul.f32 %v612, 0.1
    %v1163 = vmul.f32 %v1153, 0.1
    %v1164 = vmul.f32 %v1155, 0.1
    %v1165 = vsel %vm1157, %v610, %v1161
    %v1166 = vsel %vm1158, %v612, %v1162
    %v1167 = vsel %vm1159, %v1153, %v1163
    %v1168 = vsel %vm1160, %v1155, %v1164
    %1169 = vst [vmem:[%s3] sm:$0xff] %v1165
    %1170 = vst [vmem:[%s3 + $0x8] sm:$0xff] %v1166
    %1171 = vst [vmem:[%s3 + $0x10] sm:$0xff] %v1167
    %1172 = vst [vmem:[%s3 + $0x18] sm:$0xff] %v1168
    // Predicated region
    $region18: #{_lambda_.1} parent=1 // pred_check
      _
    $region19: #{_lambda_.1} parent=1 // pred_check_branch
      %1174 = sbr.rel (0) target = $region21
    $region20: #{_lambda_.1} parent=1 // pred_region
      _
    $region21: #{_lambda_.1} parent=1 // pred_fallthru
      _
    // Predicated region
    $region22: #{_lambda_.1} parent=1 // pred_check
      _
    $region23: #{_lambda_.1} parent=1 // pred_check_branch
      %1176 = sbr.rel (0) target = $region25
    $region24: #{_lambda_.1} parent=1 // pred_region
      _
    $region25: #{_lambda_.1} parent=1 // pred_fallthru
      _
    %1177 = vsyncpa [#allocation3], 1

</llo_original>
